<compile_context>
chip_gen: v7x
topology: tpu7x:2x2x1
jax: 0.10.0
libtpu: 0.0.40
codegen_flags: <defaults>
</compile_context>

<pallas_src>
import functools

import jax
import jax.numpy as jnp
import numpy as np
from jax import lax
from jax.experimental import pallas as pl
from jax.experimental.pallas import tpu as pltpu

TEMPERATURE = 0.07        # SupConLoss defaults
BASE_TEMPERATURE = 0.07


def _round_up(x, m):
    return ((x + m - 1) // m) * m


def _est_vmem_bytes(tq, tk, h_pad):
    qb = 2 * tq * h_pad * 2          # double-buffered bf16 anchor block
    kb = 2 * tk * h_pad * 2          # double-buffered bf16 contrast block
    st = tq * tk * 4                 # one f32 similarity tile
    return qb + kb + 6 * st + (64 << 10)   # masks / exp temporaries + scratch


def _choose_tiles(n_q, n_k, h_pad, budget=20 << 20):
    """Pick (tq, tk).  Prefer a single full-extent K block when it fits."""
    nq16 = max(16, _round_up(n_q, 16))
    tq = next((c for c in (256, 128, 64, 32, 16) if c <= nq16), 16)
    while tq > 16 and _est_vmem_bytes(tq, 128, h_pad) > budget:
        tq //= 2
    full_k = _round_up(max(n_k, 1), 128)
    for tk in (full_k, 2048, 1024, 512, 256, 128):
        if tk <= full_k and _est_vmem_bytes(tq, tk, h_pad) <= budget:
            return tq, tk
    return tq, 128


def _supcon_kernel(qf_ref, kf_ref, lq_ref, lk_ref, cnt_ref, out_ref,
                   m_ref, l_ref, a_ref, *, inv_t, out_scale, self_stride):
    qi = pl.program_id(0)
    ki = pl.program_id(1)

    @pl.when(ki == 0)
    def _init():
        m_ref[...] = jnp.full(m_ref.shape, -jnp.inf, m_ref.dtype)
        l_ref[...] = jnp.zeros(l_ref.shape, l_ref.dtype)
        a_ref[...] = jnp.zeros(a_ref.shape, a_ref.dtype)

    # [tq, tk] raw similarities: bf16 operands, f32 accumulation on the MXU;
    # both feature axes are contracted directly (no in-kernel transpose).
    s = lax.dot_general(qf_ref[...], kf_ref[...],
                        (((1,), (1,)), ((), ())),
                        preferred_element_type=jnp.float32)
    tq, tk = s.shape

    # Self-contrast exclusion.  Global anchor row r = qi*tq + ri owns contrast
    # column r*self_stride; global contrast column c = ki*tk + ci.
    ri = lax.broadcasted_iota(jnp.int32, (tq, tk), 0)
    ci = lax.broadcasted_iota(jnp.int32, (tq, tk), 1)
    not_self = (ri * self_stride - ci) != (ki * tk - qi * tq * self_stride)

    lab_q = lq_ref[...]                       # [tq, 1] int32 (-1 => padding)
    lab_k = lk_ref[...]                       # [1, tk] int32 (-1 => padding)
    den_mask = not_self & (lab_k >= 0)        # denominator terms (self/pad excluded)
    pos_mask = (lab_q == lab_k) & den_mask    # positives (self excluded)

    # Online log-sum-exp over the contrast axis.  The running max is taken
    # over *valid* denominator entries only, so padded columns / unnormalized
    # similarities cannot skew the shift.
    m_prev = m_ref[...]
    m_new = jnp.maximum(m_prev,
                        jnp.max(jnp.where(den_mask, s, -jnp.inf),
                                axis=1, keepdims=True))
    alpha = jnp.exp((m_prev - m_new) * inv_t)
    p_blk = jnp.where(den_mask, jnp.exp((s - m_new) * inv_t), 0.0)
    l_ref[...] = l_ref[...] * alpha + jnp.sum(p_blk, axis=1, keepdims=True)
    m_ref[...] = m_new

    # Positive-masked raw-similarity sum (linear in s => no max rescaling).
    a_ref[...] = a_ref[...] + jnp.sum(jnp.where(pos_mask, s, 0.0),
                                      axis=1, keepdims=True)

    @pl.when(ki == pl.num_programs(1) - 1)
    def _finalize():
        # log sum_{j != i} exp(s_ij / T)
        lse = m_ref[...] * inv_t + jnp.log(l_ref[...])
        cnt = cnt_ref[...]                    # positives per anchor (from wrapper)
        mean_log_prob_pos = (a_ref[...] * inv_t - cnt * lse) / (cnt + 1e-8)
        out_ref[...] = out_scale * mean_log_prob_pos


def supcon_loss(features, labels=None, mask=None, *,
                temperature=TEMPERATURE, contrast_mode='all',
                base_temperature=BASE_TEMPERATURE,
                tile_q=None, tile_k=None):
    """SupConLoss.forward.  features: [B, n_views, ...]; labels: [B] ints."""
    features = jnp.asarray(features)
    if features.ndim < 3:
        raise ValueError('`features` needs to be [batch_size, n_views, ...], '
                         'at least 3 dimensions are required')
    if features.ndim > 3:
        features = features.reshape(features.shape[0], features.shape[1], -1)
    if mask is not None:
        # TODO(synk): explicit precomputed `mask=` path not kernelized (it
        # would require shipping an O(B^2) mask); only the `labels` path is.
        raise NotImplementedError('explicit `mask` argument is not supported')
    if labels is None:
        raise ValueError('labels are required')
    if contrast_mode not in ('all', 'one'):
        raise ValueError('Unknown mode: {}'.format(contrast_mode))

    B, V, D = features.shape
    labels = jnp.asarray(labels).reshape(-1).astype(jnp.int32)
    if labels.shape[0] != B:
        raise ValueError('Num of labels does not match num of features')
    labels = labels - jnp.min(labels)     # labels >= 0 (padding sentinel is -1)

    N = B * V
    # Batch-major contrast rows (no view-major transpose pass over HBM).
    contrast = features.reshape(N, D)
    lab_k_full = jnp.repeat(labels, V)                           # [N]

    # Positive counts per anchor, computed once here: V*count[label] - 1.
    same = jnp.sum((labels[:, None] == labels[None, :]).astype(jnp.float32),
                   axis=1)                                       # [B]
    cnt_b = V * same - 1.0

    if contrast_mode == 'all':
        anchors = contrast
        lab_q_full = lab_k_full
        cnt_full = jnp.repeat(cnt_b, V)
        self_stride = 1           # anchor row r <-> contrast column r
    else:  # 'one': only the B first-view anchors are computed.
        anchors = features[:, 0, :]
        lab_q_full = labels
        cnt_full = cnt_b
        self_stride = V           # anchor i <-> contrast column i*V

    n_q, n_k = anchors.shape[0], N
    h_pad = _round_up(D, 128)

    tq_auto, tk_auto = _choose_tiles(n_q, n_k, h_pad)
    tq = int(tile_q) if tile_q else tq_auto
    tk = int(tile_k) if tile_k else tk_auto
    if tq % 8 != 0 or tk % 128 != 0:
        raise ValueError('tile_q must be a multiple of 8 and tile_k a multiple of 128')

    n_q_pad = _round_up(n_q, tq)
    n_k_pad = _round_up(n_k, tk)
    grid_q, grid_k = n_q_pad // tq, n_k_pad // tk

    qfeat = jnp.pad(anchors, ((0, n_q_pad - n_q), (0, h_pad - D))).astype(jnp.bfloat16)
    kfeat = jnp.pad(contrast, ((0, n_k_pad - n_k), (0, h_pad - D))).astype(jnp.bfloat16)
    lab_q = jnp.pad(lab_q_full, (0, n_q_pad - n_q),
                    constant_values=-1).reshape(n_q_pad, 1)
    lab_k = jnp.pad(lab_k_full, (0, n_k_pad - n_k),
                    constant_values=-1).reshape(1, n_k_pad)
    cnt_q = jnp.pad(cnt_full, (0, n_q_pad - n_q)).astype(jnp.float32).reshape(n_q_pad, 1)

    kernel = functools.partial(
        _supcon_kernel,
        inv_t=1.0 / float(temperature),
        out_scale=-(float(temperature) / float(base_temperature)),
        self_stride=int(self_stride))

    est = _est_vmem_bytes(tq, tk, h_pad)
    vmem_limit = int(min(max(32 << 20, 2 * est), 48 << 20))
    cost = pl.CostEstimate(
        flops=2 * n_q_pad * n_k_pad * h_pad,
        transcendentals=n_q_pad * n_k_pad,
        bytes_accessed=(n_q_pad * h_pad * 2            # anchors read once
                        + grid_q * n_k_pad * h_pad * 2  # contrast per q block
                        + 4 * (2 * n_q_pad + n_k_pad)))

    per_anchor = pl.pallas_call(
        kernel,
        out_shape=jax.ShapeDtypeStruct((n_q_pad, 1), jnp.float32),
        grid_spec=pltpu.PrefetchScalarGridSpec(
            num_scalar_prefetch=0,
            grid=(grid_q, grid_k),
            in_specs=[
                pl.BlockSpec((tq, h_pad), lambda qi, ki: (qi, 0)),   # anchor rows
                pl.BlockSpec((tk, h_pad), lambda qi, ki: (ki, 0)),   # contrast rows
                pl.BlockSpec((tq, 1), lambda qi, ki: (qi, 0)),       # anchor labels
                pl.BlockSpec((1, tk), lambda qi, ki: (0, ki)),       # contrast labels
                pl.BlockSpec((tq, 1), lambda qi, ki: (qi, 0)),       # positive counts
            ],
            out_specs=pl.BlockSpec((tq, 1), lambda qi, ki: (qi, 0)),
            scratch_shapes=[pltpu.VMEM((tq, 1), jnp.float32)] * 3,   # m, l, a
        ),
        compiler_params=pltpu.CompilerParams(
            dimension_semantics=("parallel", "arbitrary"),
            vmem_limit_bytes=vmem_limit),
        cost_estimate=cost,
    )(qfeat, kfeat, lab_q, lab_k, cnt_q)

    return jnp.mean(per_anchor[:n_q, 0])


# ------------------- pure-JAX reference (exact PyTorch mirror) -------------------
def _ref_supcon(features, labels, temperature, base_temperature, contrast_mode):
    B, V, _ = features.shape
    N = B * V
    contrast = jnp.transpose(features, (1, 0, 2)).reshape(N, -1)   # view-major
    if contrast_mode == 'one':
        anchor = features[:, 0]
        anchor_count = 1
    else:
        anchor = contrast
        anchor_count = V
    n_anchor = anchor.shape[0]
    adc = (anchor @ contrast.T) / temperature
    logits = adc - jnp.max(adc, axis=1, keepdims=True)
    mask = (labels[:, None] == labels[None, :]).astype(jnp.float32)
    mask = jnp.tile(mask, (anchor_count, V))
    logits_mask = 1.0 - jnp.eye(n_anchor, N, dtype=jnp.float32)
    mask = mask * logits_mask
    exp_logits = jnp.exp(logits) * logits_mask
    log_prob = logits - jnp.log(jnp.sum(exp_logits, axis=1, keepdims=True))
    mlpp = jnp.sum(mask * log_prob, axis=1) / (jnp.sum(mask, axis=1) + 1e-8)
    loss = -(temperature / base_temperature) * mlpp
    return jnp.mean(loss)


if __name__ == "__main__":
    key = jax.random.PRNGKey(0)

    def make_inputs(k, B, V, D, C):
        k1, k2, k3 = jax.random.split(k, 3)
        labels = jax.random.randint(k1, (B,), 0, C, dtype=jnp.int32)
        protos = jax.random.normal(k2, (C, D), dtype=jnp.float32)
        feats = protos[labels][:, None, :] + 0.3 * jax.random.normal(
            k3, (B, V, D), dtype=jnp.float32)
        feats = feats / jnp.linalg.norm(feats, axis=-1, keepdims=True)
        return feats, labels

    k1, k2 = jax.random.split(key)

    # Test 1: small single-tile case (whole contrast matrix resident in VMEM).
    feats, labels = make_inputs(k1, 8, 2, 32, 4)
    # The kernel quantizes MXU operands to bf16; feed the reference the same
    # bf16-rounded features to validate the kernel logic.
    feats_q = feats.astype(jnp.bfloat16).astype(jnp.float32)
    for mode in ("all", "one"):
        got = jax.block_until_ready(supcon_loss(feats, labels, contrast_mode=mode))
        ref = _ref_supcon(feats_q, labels, TEMPERATURE, BASE_TEMPERATURE, mode)
        np.testing.assert_allclose(np.asarray(got), np.asarray(ref),
                                   rtol=2e-3, atol=2e-3)

    # Test 2: multi-tile grid.  Default tiles (single full-K block, padded q
    # blocks) and forced small tiles (online LSE across K blocks, padded k
    # tiles, off-diagonal self-mask logic, 'one'-mode stride-V self columns).
    feats2, labels2 = make_inputs(k2, 72, 2, 96, 5)
    feats2_q = feats2.astype(jnp.bfloat16).astype(jnp.float32)
    ref2_all = _ref_supcon(feats2_q, labels2, TEMPERATURE, BASE_TEMPERATURE, 'all')
    got2_def = jax.block_until_ready(supcon_loss(feats2, labels2, contrast_mode='all'))
    np.testing.assert_allclose(np.asarray(got2_def), np.asarray(ref2_all),
                               rtol=2e-3, atol=2e-3)
    for mode in ("all", "one"):
        got = jax.block_until_ready(
            supcon_loss(feats2, labels2, contrast_mode=mode, tile_q=64, tile_k=128))
        ref = _ref_supcon(feats2_q, labels2, TEMPERATURE, BASE_TEMPERATURE, mode)
        np.testing.assert_allclose(np.asarray(got), np.asarray(ref),
                                   rtol=2e-3, atol=2e-3)

    print("KERNEL_OK")
</pallas_src>

<mosaic_0001>
module attributes {stable_mosaic.version = 11 : i64} {
  func.func @_supcon_kernel(%arg0: i32, %arg1: i32, %arg2: memref<16x128xbf16, #tpu.memory_space<vmem>>, %arg3: memref<128x128xbf16, #tpu.memory_space<vmem>>, %arg4: memref<16x1xi32, #tpu.memory_space<vmem>>, %arg5: memref<1x128xi32, #tpu.memory_space<vmem>>, %arg6: memref<16x1xf32, #tpu.memory_space<vmem>>, %arg7: memref<16x1xf32, #tpu.memory_space<vmem>>, %arg8: memref<16x1xf32, #tpu.memory_space<vmem>>, %arg9: memref<16x1xf32, #tpu.memory_space<vmem>>, %arg10: memref<16x1xf32, #tpu.memory_space<vmem>>) attributes {dimension_semantics = [#tpu.dimension_semantics<parallel>, #tpu.dimension_semantics<arbitrary>], iteration_bounds = array<i64: 1, 1>, scalar_prefetch = 0 : i64, scratch_operands = 3 : i64, tpu.core_type = #tpu.core_type<tc>, window_params = [{transform_indices = @transform_0, window_bounds = array<i64: 16, 128>}, {transform_indices = @transform_1, window_bounds = array<i64: 128, 128>}, {transform_indices = @transform_2, window_bounds = array<i64: 16, 1>}, {transform_indices = @transform_3, window_bounds = array<i64: 1, 128>}, {transform_indices = @transform_4, window_bounds = array<i64: 16, 1>}, {transform_indices = @transform_5, window_bounds = array<i64: 16, 1>}]} {
    %c0_i32 = arith.constant 0 : i32
    %0 = arith.cmpi eq, %arg1, %c0_i32 : i32
    %1 = arith.extui %0 : i1 to i32
    %c0_i32_0 = arith.constant 0 : i32
    %2 = arith.cmpi ne, %1, %c0_i32_0 : i32
    scf.if %2 {
      %cst_32 = arith.constant 0xFF800000 : f32
      %61 = vector.broadcast %cst_32 : f32 to vector<16x1xf32>
      %c0_33 = arith.constant 0 : index
      %c0_34 = arith.constant 0 : index
      %62 = vector.load %arg8[%c0_33, %c0_34] : memref<16x1xf32, #tpu.memory_space<vmem>>, vector<16x1xf32>
      tpu.vector_store %arg8[%c0_33, %c0_34], %61 {strides = array<i32>} : memref<16x1xf32, #tpu.memory_space<vmem>>, vector<16x1xf32>,
      %cst_35 = arith.constant 0.000000e+00 : f32
      %63 = vector.broadcast %cst_35 : f32 to vector<16x1xf32>
      %c0_36 = arith.constant 0 : index
      %c0_37 = arith.constant 0 : index
      %64 = vector.load %arg9[%c0_36, %c0_37] : memref<16x1xf32, #tpu.memory_space<vmem>>, vector<16x1xf32>
      tpu.vector_store %arg9[%c0_36, %c0_37], %63 {strides = array<i32>} : memref<16x1xf32, #tpu.memory_space<vmem>>, vector<16x1xf32>,
      %cst_38 = arith.constant 0.000000e+00 : f32
      %65 = vector.broadcast %cst_38 : f32 to vector<16x1xf32>
      %c0_39 = arith.constant 0 : index
      %c0_40 = arith.constant 0 : index
      %66 = vector.load %arg10[%c0_39, %c0_40] : memref<16x1xf32, #tpu.memory_space<vmem>>, vector<16x1xf32>
      tpu.vector_store %arg10[%c0_39, %c0_40], %65 {strides = array<i32>} : memref<16x1xf32, #tpu.memory_space<vmem>>, vector<16x1xf32>,
    } else {
    }
    %c0 = arith.constant 0 : index
    %c0_1 = arith.constant 0 : index
    %3 = vector.load %arg2[%c0, %c0_1] : memref<16x128xbf16, #tpu.memory_space<vmem>>, vector<16x128xbf16>
    %c0_2 = arith.constant 0 : index
    %c0_3 = arith.constant 0 : index
    %4 = vector.load %arg3[%c0_2, %c0_3] : memref<128x128xbf16, #tpu.memory_space<vmem>>, vector<128x128xbf16>
    %cst = arith.constant dense<0.000000e+00> : vector<16x128xf32>
    %5 = tpu.matmul %3, %4, %cst {dimension_numbers = #tpu.dot_dimension_numbers<[1], [1], [0], [0], [0, 0, 1, 0], [], []>} : vector<16x128xbf16>, vector<128x128xbf16>, vector<16x128xf32> -> vector<16x128xf32>
    %6 = tpu.iota {dimensions = array<i32: 0>} : vector<16x128xi32>
    %7 = tpu.iota {dimensions = array<i32: 1>} : vector<16x128xi32>
    %c1_i32 = arith.constant 1 : i32
    %8 = vector.broadcast %c1_i32 : i32 to vector<16x128xi32>
    %9 = arith.muli %6, %8 : vector<16x128xi32>
    %10 = arith.subi %9, %7 : vector<16x128xi32>
    %c128_i32 = arith.constant 128 : i32
    %11 = arith.muli %arg1, %c128_i32 : i32
    %c16_i32 = arith.constant 16 : i32
    %12 = arith.muli %arg0, %c16_i32 : i32
    %c1_i32_4 = arith.constant 1 : i32
    %13 = arith.muli %12, %c1_i32_4 : i32
    %14 = arith.subi %11, %13 : i32
    %15 = vector.broadcast %14 : i32 to vector<16x128xi32>
    %16 = arith.cmpi ne, %10, %15 : vector<16x128xi32>
    %c0_5 = arith.constant 0 : index
    %c0_6 = arith.constant 0 : index
    %17 = vector.load %arg4[%c0_5, %c0_6] : memref<16x1xi32, #tpu.memory_space<vmem>>, vector<16x1xi32>
    %c0_7 = arith.constant 0 : index
    %c0_8 = arith.constant 0 : index
    %18 = vector.load %arg5[%c0_7, %c0_8] : memref<1x128xi32, #tpu.memory_space<vmem>>, vector<1x128xi32>
    %c0_i32_9 = arith.constant 0 : i32
    %19 = vector.broadcast %c0_i32_9 : i32 to vector<1x128xi32>
    %20 = arith.cmpi sge, %18, %19 : vector<1x128xi32>
    %21 = vector.broadcast %20 : vector<1x128xi1> to vector<16x128xi1>
    %22 = arith.andi %16, %21 : vector<16x128xi1>
    %23 = vector.broadcast %17 : vector<16x1xi32> to vector<16x128xi32>
    %24 = vector.broadcast %18 : vector<1x128xi32> to vector<16x128xi32>
    %25 = arith.cmpi eq, %23, %24 : vector<16x128xi32>
    %26 = arith.andi %25, %22 : vector<16x128xi1>
    %c0_10 = arith.constant 0 : index
    %c0_11 = arith.constant 0 : index
    %27 = vector.load %arg8[%c0_10, %c0_11] : memref<16x1xf32, #tpu.memory_space<vmem>>, vector<16x1xf32>
    %cst_12 = arith.constant 0xFF800000 : f32
    %28 = vector.broadcast %cst_12 : f32 to vector<16x128xf32>
    %29 = arith.select %22, %5, %28 : vector<16x128xi1>, vector<16x128xf32>
    %cst_13 = arith.constant dense<0xFF800000> : vector<16xf32>
    %30 = vector.multi_reduction <maximumf>, %29, %cst_13 [1] : vector<16x128xf32> to vector<16xf32>
    %31 = vector.shape_cast %30 : vector<16xf32> to vector<16x1xf32>
    %32 = arith.maximumf %27, %31 : vector<16x1xf32>
    %33 = arith.subf %27, %32 : vector<16x1xf32>
    %cst_14 = arith.constant 14.2857141 : f32
    %34 = vector.broadcast %cst_14 : f32 to vector<16x1xf32>
    %35 = arith.mulf %33, %34 : vector<16x1xf32>
    %36 = math.exp %35 : vector<16x1xf32>
    %37 = vector.broadcast %32 : vector<16x1xf32> to vector<16x128xf32>
    %38 = arith.subf %5, %37 : vector<16x128xf32>
    %cst_15 = arith.constant 14.2857141 : f32
    %39 = vector.broadcast %cst_15 : f32 to vector<16x128xf32>
    %40 = arith.mulf %38, %39 : vector<16x128xf32>
    %41 = math.exp %40 : vector<16x128xf32>
    %cst_16 = arith.constant 0.000000e+00 : f32
    %42 = vector.broadcast %cst_16 : f32 to vector<16x128xf32>
    %43 = arith.select %22, %41, %42 : vector<16x128xi1>, vector<16x128xf32>
    %c0_17 = arith.constant 0 : index
    %c0_18 = arith.constant 0 : index
    %44 = vector.load %arg9[%c0_17, %c0_18] : memref<16x1xf32, #tpu.memory_space<vmem>>, vector<16x1xf32>
    %45 = arith.mulf %44, %36 : vector<16x1xf32>
    %cst_19 = arith.constant dense<0.000000e+00> : vector<16xf32>
    %46 = vector.multi_reduction <add>, %43, %cst_19 [1] : vector<16x128xf32> to vector<16xf32>
    %47 = vector.shape_cast %46 : vector<16xf32> to vector<16x1xf32>
    %48 = arith.addf %45, %47 : vector<16x1xf32>
    %c0_20 = arith.constant 0 : index
    %c0_21 = arith.constant 0 : index
    %49 = vector.load %arg9[%c0_20, %c0_21] : memref<16x1xf32, #tpu.memory_space<vmem>>, vector<16x1xf32>
    tpu.vector_store %arg9[%c0_20, %c0_21], %48 {strides = array<i32>} : memref<16x1xf32, #tpu.memory_space<vmem>>, vector<16x1xf32>,
    %c0_22 = arith.constant 0 : index
    %c0_23 = arith.constant 0 : index
    %50 = vector.load %arg8[%c0_22, %c0_23] : memref<16x1xf32, #tpu.memory_space<vmem>>, vector<16x1xf32>
    tpu.vector_store %arg8[%c0_22, %c0_23], %32 {strides = array<i32>} : memref<16x1xf32, #tpu.memory_space<vmem>>, vector<16x1xf32>,
    %c0_24 = arith.constant 0 : index
    %c0_25 = arith.constant 0 : index
    %51 = vector.load %arg10[%c0_24, %c0_25] : memref<16x1xf32, #tpu.memory_space<vmem>>, vector<16x1xf32>
    %cst_26 = arith.constant 0.000000e+00 : f32
    %52 = vector.broadcast %cst_26 : f32 to vector<16x128xf32>
    %53 = arith.select %26, %5, %52 : vector<16x128xi1>, vector<16x128xf32>
    %cst_27 = arith.constant dense<0.000000e+00> : vector<16xf32>
    %54 = vector.multi_reduction <add>, %53, %cst_27 [1] : vector<16x128xf32> to vector<16xf32>
    %55 = vector.shape_cast %54 : vector<16xf32> to vector<16x1xf32>
    %56 = arith.addf %51, %55 : vector<16x1xf32>
    %c0_28 = arith.constant 0 : index
    %c0_29 = arith.constant 0 : index
    %57 = vector.load %arg10[%c0_28, %c0_29] : memref<16x1xf32, #tpu.memory_space<vmem>>, vector<16x1xf32>
    tpu.vector_store %arg10[%c0_28, %c0_29], %56 {strides = array<i32>} : memref<16x1xf32, #tpu.memory_space<vmem>>, vector<16x1xf32>,
    %c0_i32_30 = arith.constant 0 : i32
    %58 = arith.cmpi eq, %arg1, %c0_i32_30 : i32
    %59 = arith.extui %58 : i1 to i32
    %c0_i32_31 = arith.constant 0 : i32
    %60 = arith.cmpi ne, %59, %c0_i32_31 : i32
    scf.if %60 {
      %c0_32 = arith.constant 0 : index
      %c0_33 = arith.constant 0 : index
      %61 = vector.load %arg8[%c0_32, %c0_33] : memref<16x1xf32, #tpu.memory_space<vmem>>, vector<16x1xf32>
      %cst_34 = arith.constant 14.2857141 : f32
      %62 = vector.broadcast %cst_34 : f32 to vector<16x1xf32>
      %63 = arith.mulf %61, %62 : vector<16x1xf32>
      %c0_35 = arith.constant 0 : index
      %c0_36 = arith.constant 0 : index
      %64 = vector.load %arg9[%c0_35, %c0_36] : memref<16x1xf32, #tpu.memory_space<vmem>>, vector<16x1xf32>
      %65 = math.log %64 : vector<16x1xf32>
      %66 = arith.addf %63, %65 : vector<16x1xf32>
      %c0_37 = arith.constant 0 : index
      %c0_38 = arith.constant 0 : index
      %67 = vector.load %arg6[%c0_37, %c0_38] : memref<16x1xf32, #tpu.memory_space<vmem>>, vector<16x1xf32>
      %c0_39 = arith.constant 0 : index
      %c0_40 = arith.constant 0 : index
      %68 = vector.load %arg10[%c0_39, %c0_40] : memref<16x1xf32, #tpu.memory_space<vmem>>, vector<16x1xf32>
      %cst_41 = arith.constant 14.2857141 : f32
      %69 = vector.broadcast %cst_41 : f32 to vector<16x1xf32>
      %70 = arith.mulf %68, %69 : vector<16x1xf32>
      %71 = arith.mulf %67, %66 : vector<16x1xf32>
      %72 = arith.subf %70, %71 : vector<16x1xf32>
      %cst_42 = arith.constant 9.99999993E-9 : f32
      %73 = vector.broadcast %cst_42 : f32 to vector<16x1xf32>
      %74 = arith.addf %67, %73 : vector<16x1xf32>
      %75 = arith.divf %72, %74 : vector<16x1xf32>
      %cst_43 = arith.constant -1.000000e+00 : f32
      %76 = vector.broadcast %cst_43 : f32 to vector<16x1xf32>
      %77 = arith.mulf %76, %75 : vector<16x1xf32>
      %c0_44 = arith.constant 0 : index
      %c0_45 = arith.constant 0 : index
      %78 = vector.load %arg7[%c0_44, %c0_45] : memref<16x1xf32, #tpu.memory_space<vmem>>, vector<16x1xf32>
      tpu.vector_store %arg7[%c0_44, %c0_45], %77 {strides = array<i32>} : memref<16x1xf32, #tpu.memory_space<vmem>>, vector<16x1xf32>,
    } else {
    }
    return
  }
  func.func @transform_0(%arg0: i32, %arg1: i32) -> (i32, i32) {
    %c0_i32 = arith.constant 0 : i32
    %c0_i32_0 = arith.constant 0 : i32
    return %arg0, %c0_i32 : i32, i32
  }
  func.func @transform_1(%arg0: i32, %arg1: i32) -> (i32, i32) {
    %c0_i32 = arith.constant 0 : i32
    %c0_i32_0 = arith.constant 0 : i32
    return %arg1, %c0_i32 : i32, i32
  }
  func.func @transform_2(%arg0: i32, %arg1: i32) -> (i32, i32) {
    %c0_i32 = arith.constant 0 : i32
    %c0_i32_0 = arith.constant 0 : i32
    return %arg0, %c0_i32 : i32, i32
  }
  func.func @transform_3(%arg0: i32, %arg1: i32) -> (i32, i32) {
    %c0_i32 = arith.constant 0 : i32
    %c0_i32_0 = arith.constant 0 : i32
    return %c0_i32, %arg1 : i32, i32
  }
  func.func @transform_4(%arg0: i32, %arg1: i32) -> (i32, i32) {
    %c0_i32 = arith.constant 0 : i32
    %c0_i32_0 = arith.constant 0 : i32
    return %arg0, %c0_i32 : i32, i32
  }
  func.func @transform_5(%arg0: i32, %arg1: i32) -> (i32, i32) {
    %c0_i32 = arith.constant 0 : i32
    %c0_i32_0 = arith.constant 0 : i32
    return %arg0, %c0_i32 : i32, i32
  }
}

</mosaic_0001>

<llo_original>
// kernel: tpu_custom_call.1
$region0: #{tpu_custom_call.1}
  #allocation0 [shape = 'u32[]', space=smem, size = 0x4, offset = 0x4, fixed_abs, tag = 'smem constant byte address 0x4 - core index']
  #allocation1 [shape = 'u32[144,128]{1,0:T(1,128)}', space=vmem, size = 0x12000, scoped, tag = 'internal scratch']
  #allocation2 [shape = 'f32[16,1]{1,0:T(8,128)}', space=vmem, size = 0x2000, scoped, tag = 'scratch operand']
  #allocation3 [shape = 'f32[16,1]{1,0:T(8,128)}', space=vmem, size = 0x2000, scoped, tag = 'scratch operand']
  #allocation4 [shape = 'f32[16,1]{1,0:T(8,128)}', space=vmem, size = 0x2000, scoped, tag = 'scratch operand']
  %s0 = inlined_call_operand.vmem [shape: bf16[16,128], index: 0, kind: input, shape index: {}]
  %s1 = inlined_call_operand.hbm [shape: bf16[128,128], index: 1, kind: input, shape index: {}]
  %s2 = inlined_call_operand.vmem [shape: s32[16,1], index: 2, kind: input, shape index: {}]
  %s3 = inlined_call_operand.vmem [shape: s32[1,128], index: 3, kind: input, shape index: {}]
  %s4 = inlined_call_operand.vmem [shape: f32[16,1], index: 4, kind: input, shape index: {}]
  %s5 = inlined_call_operand.vmem [shape: f32[16,1], index: 5, kind: output, shape index: {}]
  %s6 = sld [smem:[#allocation0]]
  $region42: #{tpu_custom_call.1} parent=0
    _
  %s8 = ssub.s32 1, %s6
  %s9 = scalar_select 0, %s8, %s6
  $region1: #{tpu_custom_call.1} parent=0
    #allocation5 [shape = 'u8[32768]{0}', space=vmem, size = 0x8000, scoped, tag = 'input window, operand 1, single buffered']
    #allocation6 [shape = 's32[1]{0}', space=sflag, size = 0x4, scoped, tag = 'scoped memory for tpu_custom_call.1']
    %10 = vsyncpa [#allocation6], 0
    // Predicated region
    $region2: #{tpu_custom_call.1} parent=1 // pred_check
      _
    $region3: #{tpu_custom_call.1} parent=1 // pred_check_branch
      %12 = sbr.rel (0) target = $region5
    $region4: #{tpu_custom_call.1} parent=1 // pred_region
      _
    $region5: #{tpu_custom_call.1} parent=1 // pred_fallthru
      _
    // Predicated region
    $region6: #{tpu_custom_call.1} parent=1 // pred_check
      _
    $region7: #{tpu_custom_call.1} parent=1 // pred_check_branch
      %14 = sbr.rel (0) target = $region9
    $region8: #{tpu_custom_call.1} parent=1 // pred_region
      %s16 = ssub.s32 1024, 1024
      %17 = vsyncadd [#allocation6], %s16
      %s18 = sshll.u32 [#allocation5], 4
      %s19 = int_to_ptr.vmem [resolvable:$true] %s18
      %24 = dma.hbm_to_vmem [thread:$0]  %s1, 1024, %s19, [#allocation6], 64, 64, 4
    $region9: #{tpu_custom_call.1} parent=1 // pred_fallthru
      _
    // Predicated region
    $region10: #{tpu_custom_call.1} parent=1 // pred_check
      _
    $region11: #{tpu_custom_call.1} parent=1 // pred_check_branch
      %26 = sbr.rel (0) target = $region13
    $region12: #{tpu_custom_call.1} parent=1 // pred_region
      _
    $region13: #{tpu_custom_call.1} parent=1 // pred_fallthru
      _
    // Predicated region
    $region14: #{tpu_custom_call.1} parent=1 // pred_check
      _
    $region15: #{tpu_custom_call.1} parent=1 // pred_check_branch
      %28 = sbr.rel (0) target = $region17
    $region16: #{tpu_custom_call.1} parent=1 // pred_region
      _
    $region17: #{tpu_custom_call.1} parent=1 // pred_fallthru
      _
    // Predicated region
    $region18: #{tpu_custom_call.1} parent=1 // pred_check
      _
    $region19: #{tpu_custom_call.1} parent=1 // pred_check_branch
      %30 = sbr.rel (0) target = $region21
    $region20: #{tpu_custom_call.1} parent=1 // pred_region
      _
    $region21: #{tpu_custom_call.1} parent=1 // pred_fallthru
      _
    // Predicated region
    $region22: #{tpu_custom_call.1} parent=1 // pred_check
      _
    $region23: #{tpu_custom_call.1} parent=1 // pred_check_branch
      %32 = sbr.rel (0) target = $region25
    $region24: #{tpu_custom_call.1} parent=1 // pred_region
      %33 = dma.done [#allocation6], 1024
    $region25: #{tpu_custom_call.1} parent=1 // pred_fallthru
      _
    %p35 = scmp.eq.s32.totalorder 0, 0
    // Predicated region
    $region26: #{tpu_custom_call.1} parent=1 // pred_check
      %p36 = pneg %p35
    $region27: #{tpu_custom_call.1} parent=1 // pred_check_branch
      %38 = sbr.rel (%p36) target = $region29
    $region28: #{tpu_custom_call.1} parent=1 // pred_region
      %vm39 = vcmask 7168
      %40 = vst.msk [vmem:[#allocation2] sm:$0xff] %vm39, -inf
      %41 = vst.msk [vmem:[#allocation2 + $0x8] sm:$0xff] %vm39, -inf
      %42 = vst.msk [vmem:[#allocation3] sm:$0xff] %vm39, 0.0
      %43 = vst.msk [vmem:[#allocation3 + $0x8] sm:$0xff] %vm39, 0.0
      %44 = vst.msk [vmem:[#allocation4] sm:$0xff] %vm39, 0.0
      %45 = vst.msk [vmem:[#allocation4 + $0x8] sm:$0xff] %vm39, 0.0
    $region29: #{tpu_custom_call.1} parent=1 // pred_fallthru
      _
    %v46 = vld [vmem:[%s0] sm:$0xf]
    %v47 = vld [vmem:[%s0 + $0x4] sm:$0xf]
    %v48 = vld [vmem:[#allocation5] sm:$0xf]
    %v49 = vld [vmem:[#allocation5 + $0x4] sm:$0xf]
    %v50 = vld [vmem:[#allocation5 + $0x8] sm:$0xf]
    %v51 = vld [vmem:[#allocation5 + $0xc] sm:$0xf]
    %v52 = vld [vmem:[#allocation5 + $0x10] sm:$0xf]
    %v53 = vld [vmem:[#allocation5 + $0x14] sm:$0xf]
    %v54 = vld [vmem:[#allocation5 + $0x18] sm:$0xf]
    %v55 = vld [vmem:[#allocation5 + $0x1c] sm:$0xf]
    %v56 = vld [vmem:[#allocation5 + $0x20] sm:$0xf]
    %v57 = vld [vmem:[#allocation5 + $0x24] sm:$0xf]
    %v58 = vld [vmem:[#allocation5 + $0x28] sm:$0xf]
    %v59 = vld [vmem:[#allocation5 + $0x2c] sm:$0xf]
    %v60 = vld [vmem:[#allocation5 + $0x30] sm:$0xf]
    %v61 = vld [vmem:[#allocation5 + $0x34] sm:$0xf]
    %v62 = vld [vmem:[#allocation5 + $0x38] sm:$0xf]
    %v63 = vld [vmem:[#allocation5 + $0x3c] sm:$0xf]
    %v66 = vunpack.c.l.b16 %v46
    %v67 = vunpack.c.l.b16 %v47
    %v68 = vpack.c.b16 %v67, %v66
    %v86 = vunpack.c.l.b16 %v48
    %v87 = vunpack.c.l.b16 %v49
    %v88 = vunpack.c.l.b16 %v50
    %v89 = vunpack.c.l.b16 %v51
    %v90 = vunpack.c.l.b16 %v52
    %v91 = vunpack.c.l.b16 %v53
    %v92 = vunpack.c.l.b16 %v54
    %v93 = vunpack.c.l.b16 %v55
    %v94 = vunpack.c.l.b16 %v56
    %v95 = vunpack.c.l.b16 %v57
    %v96 = vunpack.c.l.b16 %v58
    %v97 = vunpack.c.l.b16 %v59
    %v98 = vunpack.c.l.b16 %v60
    %v99 = vunpack.c.l.b16 %v61
    %v100 = vunpack.c.l.b16 %v62
    %v101 = vunpack.c.l.b16 %v63
    %v102 = vpack.c.b16 %v87, %v86
    %v103 = vpack.c.b16 %v89, %v88
    %v104 = vpack.c.b16 %v91, %v90
    %v105 = vpack.c.b16 %v93, %v92
    %v106 = vpack.c.b16 %v95, %v94
    %v107 = vpack.c.b16 %v97, %v96
    %v108 = vpack.c.b16 %v99, %v98
    %v109 = vpack.c.b16 %v101, %v100
    %118 = vmatprep.subr.bf16.mxu0 0
    %119 = vmatpush1.bf16.xpose.msra.mxu0 %v102
    %120 = vmatprep.subr.bf16.mxu0 0
    %121 = vmatpush1.bf16.xpose.msra.mxu0 %v103
    %122 = vmatprep.subr.bf16.mxu0 0
    %123 = vmatpush1.bf16.xpose.msra.mxu0 %v104
    %124 = vmatprep.subr.bf16.mxu0 0
    %125 = vmatpush1.bf16.xpose.msra.mxu0 %v105
    %126 = vmatprep.subr.bf16.mxu0 0
    %127 = vmatpush1.bf16.xpose.msra.mxu0 %v106
    %128 = vmatprep.subr.bf16.mxu0 0
    %129 = vmatpush1.bf16.xpose.msra.mxu0 %v107
    %130 = vmatprep.subr.bf16.mxu0 0
    %131 = vmatpush1.bf16.xpose.msra.mxu0 %v108
    %132 = vmatprep.subr.bf16.mxu0 0
    %133 = vmatpush1.bf16.xpose.msra.mxu0 %v109
    %134 = vmatprep.subr.bf16.mxu0 0
    %135 = vmatpush1.bf16.xpose.msra.mxu0 0
    %136 = vmatprep.subr.bf16.mxu0 0
    %137 = vmatpush1.bf16.xpose.msra.mxu0 0
    %138 = vmatprep.subr.bf16.mxu0 0
    %139 = vmatpush1.bf16.xpose.msra.mxu0 0
    %140 = vmatprep.subr.bf16.mxu0 0
    %141 = vmatpush1.bf16.xpose.msra.mxu0 0
    %142 = vmatprep.subr.bf16.mxu0 0
    %143 = vmatpush1.bf16.xpose.msra.mxu0 0
    %144 = vmatprep.subr.bf16.mxu0 0
    %145 = vmatpush1.bf16.xpose.msra.mxu0 0
    %146 = vmatprep.subr.bf16.mxu0 0
    %147 = vmatpush1.bf16.xpose.msra.mxu0 0
    %148 = vmatprep.subr.bf16.mxu0 0
    %149 = vmatpush1.bf16.xpose.msra.mxu0 0
    %150 = vmatprep.mubr.bf16.mxu0 0
    %151 = vmatmul.mubr.bf16.gmra.mrb[0].mxu0 %v68
    %v152 = vpop.f32.mrb[0].mxu0
    %v153 = vadd.f32 0.0, %v152
    %v154 = vpop.f32.mrb[0].mxu0
    %v155 = vpop.f32.mrb[0].mxu0
    %v156 = vadd.f32 0.0, %v155
    %v157 = vpop.f32.mrb[0].mxu0
    %158 = vdwg.mxu0
    %v159 = vlaneseq
    %v160 = vshrl.u32 %v159, 7
    %v161 = vadd.s32 %v160, 8
    %v162 = vlaneseq
    %v163 = vand.u32 %v162, 127
    %v164 = vsub.s32 %v160, %v163
    %v165 = vsub.s32 %v161, %v163
    %s166 = smul.u32 0, 128
    %s167 = smul.u32 0, 16
    %s168 = ssub.s32 %s166, %s167
    %v169 = vstv %s168
    %vm170 = vcmp.ne.s32.totalorder %v164, %v169
    %vm171 = vcmp.ne.s32.totalorder %v165, %v169
    %v172 = vld [vmem:[%s2] sm:$0xff]
    %v173 = vld [vmem:[%s2 + $0x8] sm:$0xff]
    %v174 = vld [vmem:[%s3] sm:$0x1]
    %vm175 = vcmp.ge.s32.totalorder %v174, 0
    %v176 = vsel %vm175, 1, 0
    %v177 = vlaneseq
    %v178 = vshrl.u32 %v177, 7
    %v179 = vsub.s32 0, %v178
    %v180 = vrot.slane %v176, %v179
    %vm181 = vcmp.eq.s32.totalorder %v180, 1
    %vm182 = vmand %vm170, %vm181
    %vm183 = vmand %vm171, %vm181
    %184 = vset.pattern.permute.xlu0 0
    %185 = vperm.xlu0 %184, %v172
    %v186 = vpop.permute.xlu0 %185
    %187 = vset.pattern.permute.xlu0 0
    %188 = vperm.xlu0 %187, %v173
    %v189 = vpop.permute.xlu0 %188
    %v190 = vlaneseq
    %v191 = vshrl.u32 %v190, 7
    %v192 = vsub.s32 0, %v191
    %v193 = vrot.slane %v174, %v192
    %vm194 = vcmp.eq.s32.totalorder %v186, %v193
    %vm195 = vcmp.eq.s32.totalorder %v189, %v193
    %vm196 = vmand %vm194, %vm182
    %vm197 = vmand %vm195, %vm183
    %v198 = vld [vmem:[#allocation2] sm:$0xff]
    %v199 = vld [vmem:[#allocation2 + $0x8] sm:$0xff]
    %v200 = vsel %vm182, %v153, -inf
    %v201 = vsel %vm183, %v156, -inf
    %202 = vmax.xlane.f32.xlu0 %v200
    %v203 = vpop.xlane.xlu0 %202
    %204 = vmax.xlane.f32.xlu0 %v201
    %v205 = vpop.xlane.xlu0 %204
    %v206 = vmax.f32 %v198, %v203
    %v207 = vmax.f32 %v199, %v205
    %v208 = vsub.f32 %v198, %v206
    %v209 = vsub.f32 %v199, %v207
    %v210 = vmul.f32 %v208, 14.285714
    %v211 = vmul.f32 %v209, 14.285714
    %v212 = vmul.f32 %v210, 1.442695
    %v213 = vpow.pop %v212
    %v214 = vmul.f32 %v211, 1.442695
    %v215 = vpow.pop %v214
    %217 = vset.pattern.permute.xlu0 0
    %218 = vperm.xlu0 %217, %v206
    %v219 = vpop.permute.xlu0 %218
    %222 = vset.pattern.permute.xlu0 0
    %223 = vperm.xlu0 %222, %v207
    %v224 = vpop.permute.xlu0 %223
    %v226 = vsub.f32 %v153, %v219
    %v227 = vsub.f32 %v156, %v224
    %v228 = vmul.f32 %v226, 14.285714
    %v229 = vmul.f32 %v227, 14.285714
    %v230 = vmul.f32 %v228, 1.442695
    %v231 = vpow.pop %v230
    %v232 = vmul.f32 %v229, 1.442695
    %v233 = vpow.pop %v232
    %v234 = vsel %vm182, %v231, 0.0
    %v235 = vsel %vm183, %v233, 0.0
    %v236 = vld [vmem:[#allocation3] sm:$0xff]
    %v237 = vld [vmem:[#allocation3 + $0x8] sm:$0xff]
    %v238 = vmul.f32 %v236, %v213
    %v239 = vmul.f32 %v237, %v215
    %240 = vadd.xlane.f32.xlu0 %v234
    %v241 = vpop.xlane.xlu0 %240
    %242 = vadd.xlane.f32.xlu0 %v235
    %v243 = vpop.xlane.xlu0 %242
    %v244 = vadd.f32 %v238, %v241
    %v245 = vadd.f32 %v239, %v243
    %vm246 = vcmask 7168
    %247 = vst.msk [vmem:[#allocation3] sm:$0xff] %vm246, %v244
    %248 = vst.msk [vmem:[#allocation3 + $0x8] sm:$0xff] %vm246, %v245
    %249 = vst.msk [vmem:[#allocation2] sm:$0xff] %vm246, %v206
    %250 = vst.msk [vmem:[#allocation2 + $0x8] sm:$0xff] %vm246, %v207
    %v251 = vld [vmem:[#allocation4] sm:$0xff]
    %v252 = vld [vmem:[#allocation4 + $0x8] sm:$0xff]
    %v253 = vsel %vm196, %v153, 0.0
    %v254 = vsel %vm197, %v156, 0.0
    %255 = vadd.xlane.f32.xlu0 %v253
    %v256 = vpop.xlane.xlu0 %255
    %257 = vadd.xlane.f32.xlu0 %v254
    %v258 = vpop.xlane.xlu0 %257
    %v259 = vadd.f32 %v251, %v256
    %v260 = vadd.f32 %v252, %v258
    %261 = vst.msk [vmem:[#allocation4] sm:$0xff] %vm246, %v259
    %262 = vst.msk [vmem:[#allocation4 + $0x8] sm:$0xff] %vm246, %v260
    // Predicated region
    $region30: #{tpu_custom_call.1} parent=1 // pred_check
      %p263 = pneg %p35
    $region31: #{tpu_custom_call.1} parent=1 // pred_check_branch
      %265 = sbr.rel (%p263) target = $region33
    $region32: #{tpu_custom_call.1} parent=1 // pred_region
      %v266 = vld [vmem:[#allocation2] sm:$0xff]
      %v267 = vld [vmem:[#allocation2 + $0x8] sm:$0xff]
      %v268 = vmul.f32 %v266, 14.285714
      %v269 = vmul.f32 %v267, 14.285714
      %v270 = vld [vmem:[#allocation3] sm:$0xff]
      %v271 = vld [vmem:[#allocation3 + $0x8] sm:$0xff]
      %v272 = vlog2.pop %v270
      %v273 = vmul.f32 %v272, 0.6931472
      %v274 = vlog2.pop %v271
      %v275 = vmul.f32 %v274, 0.6931472
      %v276 = vadd.f32 %v268, %v273
      %v277 = vadd.f32 %v269, %v275
      %v278 = vld [vmem:[%s4] sm:$0xff]
      %v279 = vld [vmem:[%s4 + $0x8] sm:$0xff]
      %v280 = vld [vmem:[#allocation4] sm:$0xff]
      %v281 = vld [vmem:[#allocation4 + $0x8] sm:$0xff]
      %v282 = vmul.f32 %v280, 14.285714
      %v283 = vmul.f32 %v281, 14.285714
      %v284 = vmul.f32 %v278, %v276
      %v285 = vmul.f32 %v279, %v277
      %v286 = vsub.f32 %v282, %v284
      %v287 = vsub.f32 %v283, %v285
      %v288 = vadd.f32 %v278, 1e-08
      %v289 = vadd.f32 %v279, 1e-08
      %v290 = vrcp.pop %v288
      %v291 = vmul.f32 %v286, %v290
      %v292 = vrcp.pop %v289
      %v293 = vmul.f32 %v287, %v292
      %v294 = vmul.f32 %v291, -1.0
      %v295 = vmul.f32 %v293, -1.0
      %296 = vst.msk [vmem:[%s5] sm:$0xff] %vm246, %v294
      %297 = vst.msk [vmem:[%s5 + $0x8] sm:$0xff] %vm246, %v295
    $region33: #{tpu_custom_call.1} parent=1 // pred_fallthru
      _
    // Predicated region
    $region34: #{tpu_custom_call.1} parent=1 // pred_check
      _
    $region35: #{tpu_custom_call.1} parent=1 // pred_check_branch
      %299 = sbr.rel (0) target = $region37
    $region36: #{tpu_custom_call.1} parent=1 // pred_region
      _
    $region37: #{tpu_custom_call.1} parent=1 // pred_fallthru
      _
    // Predicated region
    $region38: #{tpu_custom_call.1} parent=1 // pred_check
      _
    $region39: #{tpu_custom_call.1} parent=1 // pred_check_branch
      %301 = sbr.rel (0) target = $region41
    $region40: #{tpu_custom_call.1} parent=1 // pred_region
      _
    $region41: #{tpu_custom_call.1} parent=1 // pred_fallthru
      _
    %302 = vsyncpa [#allocation6], 1

</llo_original>
